<compile_context>
chip_gen: v7x
topology: tpu7x:2x2x1
jax: 0.10.0
libtpu: 0.0.40
codegen_flags: <defaults>
</compile_context>

<pallas_src>
import functools

import jax
import jax.numpy as jnp
from jax.experimental import pallas as pl
from jax.experimental.pallas import tpu as pltpu


# --------------------------------------------------------------------------- kernel

def _rnn_recurrent_kernel(pre_ref, whh_hbm, out_ref, h_ref, w_ref, dma_sem,
                          *, nonlinearity, tt):
    """Sequential part of one RNN layer (both directions share this kernel).

    Grid = (n_dir, T // tt); axis 0 ("parallel") is the direction, axis 1 ("arbitrary")
    walks time chunks.  Per chunk we run an unrolled loop over its tt timesteps:
        h = act(pre[t] + h @ W_hh^T)
    The hidden state lives in a VMEM scratch that persists across the time-chunk axis;
    W_hh^T is DMA'd once per direction into a single-buffered VMEM scratch.
    """
    d = pl.program_id(0)          # direction (0 = forward, 1 = backward)
    c = pl.program_id(1)          # time-chunk index (grid order)

    @pl.when(c == 0)
    def _():
        # One-time (per direction) weight fetch -> single-buffered resident weight.
        cp = pltpu.make_async_copy(whh_hbm.at[d], w_ref, dma_sem)
        cp.start()
        cp.wait()
        h_ref[...] = jnp.zeros_like(h_ref)       # h0 = zeros, as in forward()

    w = w_ref[...]                # (H, H), already transposed: h_new = act(pre + h @ w)

    def step(j, h):
        # Forward direction walks the chunk 0..tt-1; backward walks tt-1..0.  The
        # backward direction's *chunk block index* is also reversed in the index_map,
        # so globally it processes t = T-1 .. 0 while writing out[t] in natural order.
        i = (1 - d) * j + d * (tt - 1 - j)
        z = pre_ref[0, i] + jnp.dot(h, w, preferred_element_type=jnp.float32)
        if nonlinearity == "tanh":
            h_new = jnp.tanh(z)
        else:                      # "relu" (v5e note: f32 VPU work stays off the MXU path)
            h_new = jnp.maximum(z, 0.0)
        out_ref[0, i] = h_new.astype(out_ref.dtype)
        return h_new

    h_final = jax.lax.fori_loop(0, tt, step, h_ref[...], unroll=True)
    h_ref[...] = h_final


def _pick_time_chunk(T, max_chunk):
    tt = max(1, min(T, max_chunk))
    while T % tt:
        tt -= 1
    return tt


def _rnn_recurrent(pre, whh_t, out_dtype, *, nonlinearity, time_chunk=32):
    """pre: (n_dir, T, B, H) f32 = x @ W_ih^T + b ;  whh_t: (n_dir, H, H) = W_hh^T."""
    n_dir, T, B, H = pre.shape
    tt = _pick_time_chunk(T, time_chunk)
    Tc = T // tt

    def io_map(d, c):
        # forward direction: chunk c ; backward direction: chunk Tc-1-c (time reversed)
        tb = (1 - d) * c + d * (Tc - 1 - c)
        return (d, tb, 0, 0)

    kernel = functools.partial(_rnn_recurrent_kernel,
                               nonlinearity=nonlinearity, tt=tt)

    # Explicit VMEM budget: pre/out chunks are double-buffered by the pipeline,
    # W_hh^T and h are single-buffered scratch.  Clamp under v7x's 64 MiB VMEM.
    out_itemsize = jnp.dtype(out_dtype).itemsize
    vmem_need = (2 * tt * B * H * 4 + 2 * tt * B * H * out_itemsize
                 + H * H * 4 + B * H * 4)
    vmem_limit = min(max(int(1.25 * vmem_need) + (2 << 20), 32 << 20), 60 << 20)

    return pl.pallas_call(
        kernel,
        out_shape=jax.ShapeDtypeStruct((n_dir, T, B, H), out_dtype),
        grid_spec=pltpu.PrefetchScalarGridSpec(
            num_scalar_prefetch=0,
            grid=(n_dir, Tc),
            in_specs=[
                pl.BlockSpec((1, tt, B, H), io_map),     # pre-projected inputs (chunked)
                pl.BlockSpec(memory_space=pl.ANY),       # W_hh^T stays in HBM (manual DMA)
            ],
            out_specs=pl.BlockSpec((1, tt, B, H), io_map),
            scratch_shapes=[
                pltpu.VMEM((B, H), jnp.float32),         # hidden state (f32 accumulator)
                pltpu.VMEM((H, H), jnp.float32),         # single-buffered W_hh^T
                pltpu.SemaphoreType.DMA,
            ],
        ),
        compiler_params=pltpu.CompilerParams(
            # direction axis is independent -> "parallel" (2nd TensorCore on v7x);
            # time recurrence is sequential -> "arbitrary".
            dimension_semantics=("parallel", "arbitrary"),
            vmem_limit_bytes=vmem_limit,
        ),
    )(pre, whh_t)


# --------------------------------------------------------------------------- wrapper

def rnn_cudnn_forward(x, params, *, num_layers, bidirectional, nonlinearity,
                      time_chunk=32):
    """params[layer][direction] = (w_ih, w_hh, b_ih, b_hh).  x: (T, B, D), time-major."""
    n_dir = 2 if bidirectional else 1
    T, B, _ = x.shape

    cur = x[None]                 # layer-0 input viewed as "1-direction-major" (P,T,B,J)
    for layer in range(num_layers):
        H = params[layer][0][0].shape[0]
        wih_t = jnp.stack([params[layer][k][0].T for k in range(n_dir)])   # (K, in, H)
        whh_t = jnp.stack([params[layer][k][1].T for k in range(n_dir)])   # (K, H, H)
        bias = jnp.stack([params[layer][k][2] + params[layer][k][3]
                          for k in range(n_dir)])                          # (K, H)

        # Hoisted input projection: one large parallel matmul for the whole sequence and
        # all directions.  `cur` is direction-major (P, T, B, J) and W_ih is reshaped to
        # (K, P, J, H) so the previous layer's direction-concat never has to be
        # materialized in HBM.
        P, _, _, J = cur.shape
        w4 = wih_t.reshape(n_dir, P, J, H)
        pre = jnp.einsum('ptbj,kpjh->ktbh',
                         cur.astype(jnp.float32), w4.astype(jnp.float32),
                         preferred_element_type=jnp.float32)
        pre = pre + bias.astype(jnp.float32)[:, None, None, :]

        # TODO(synk): for realistic H on v6e/v7x, cast `pre` / W_hh^T to bfloat16 here
        # (keep the f32 hidden-state scratch and preferred_element_type=f32).
        cur = _rnn_recurrent(pre, whh_t.astype(jnp.float32), x.dtype,
                             nonlinearity=nonlinearity, time_chunk=time_chunk)
        # TODO(synk): inter-layer dropout (options['dropout']) not applied; demo uses 0.0

    # (K, T, B, H) -> (T, B, K*H): matches torch's bidirectional feature-concat order.
    K, _, _, H = cur.shape
    return jnp.transpose(cur, (1, 2, 0, 3)).reshape(T, B, K * H)


# --------------------------------------------------------------------------- reference

def _reference_forward(x, params, *, num_layers, bidirectional, nonlinearity):
    """Pure-JAX reference (lax.scan) for correctness checking."""
    act = jnp.tanh if nonlinearity == "tanh" else lambda v: jnp.maximum(v, 0.0)

    def run_dir(seq, w_ih, w_hh, b_ih, b_hh, reverse):
        xs = seq[::-1] if reverse else seq
        B = seq.shape[1]
        H = w_ih.shape[0]

        def step(h, x_t):
            h_new = act(x_t @ w_ih.T + b_ih + h @ w_hh.T + b_hh)
            return h_new, h_new

        _, ys = jax.lax.scan(step, jnp.zeros((B, H), jnp.float32), xs)
        return ys[::-1] if reverse else ys

    inp = x
    for layer in range(num_layers):
        n_dir = 2 if bidirectional else 1
        outs = [run_dir(inp, *params[layer][d], reverse=(d == 1))
                for d in range(n_dir)]
        inp = jnp.concatenate(outs, axis=-1) if n_dir == 2 else outs[0]
    return inp


def init_params(key, input_dim, hidden_size, num_layers, bidirectional):
    """Deterministic init matching nn.RNN param shapes: U(-1/sqrt(H), 1/sqrt(H))."""
    n_dir = 2 if bidirectional else 1
    bound = 1.0 / jnp.sqrt(hidden_size)
    params = []
    for layer in range(num_layers):
        in_dim = input_dim if layer == 0 else hidden_size * n_dir
        dirs = []
        for _ in range(n_dir):
            key, k1, k2, k3, k4 = jax.random.split(key, 5)
            w_ih = jax.random.uniform(k1, (hidden_size, in_dim), jnp.float32, -bound, bound)
            w_hh = jax.random.uniform(k2, (hidden_size, hidden_size), jnp.float32, -bound, bound)
            b_ih = jax.random.uniform(k3, (hidden_size,), jnp.float32, -bound, bound)
            b_hh = jax.random.uniform(k4, (hidden_size,), jnp.float32, -bound, bound)
            dirs.append((w_ih, w_hh, b_ih, b_hh))
        params.append(dirs)
    return params


if __name__ == "__main__":
    # options for RNN_cudnn
    options = dict(hidden_size=32, num_layers=2, nonlinearity="tanh",
                   bias=True, batch_first=False, dropout=0.0, bidirectional=True)
    inp_dim = 16
    seq_len, batch = 8, 2

    key = jax.random.PRNGKey(0)
    key, kx = jax.random.split(key)
    # x: (T, B, D) time-major, as expected by nn.RNN with batch_first=False
    x = jax.random.normal(kx, (seq_len, batch, inp_dim), jnp.float32)

    params = init_params(key, inp_dim, options["hidden_size"],
                         options["num_layers"], options["bidirectional"])

    fwd = jax.jit(functools.partial(
        rnn_cudnn_forward,
        num_layers=options["num_layers"],
        bidirectional=options["bidirectional"],
        nonlinearity=options["nonlinearity"]))
    out = jax.block_until_ready(fwd(x, params))

    ref = _reference_forward(x, params,
                             num_layers=options["num_layers"],
                             bidirectional=options["bidirectional"],
                             nonlinearity=options["nonlinearity"])

    n_dir = 2 if options["bidirectional"] else 1
    assert out.shape == (seq_len, batch, options["hidden_size"] * n_dir), out.shape
    assert jnp.allclose(out, ref, atol=1e-4, rtol=1e-4), (
        "mismatch vs JAX reference: max|diff|=%s" % jnp.max(jnp.abs(out - ref)))

    print("KERNEL_OK")
</pallas_src>

<mosaic_0001>
module attributes {stable_mosaic.version = 11 : i64} {
  func.func @_rnn_recurrent_kernel(%arg0: i32, %arg1: i32, %arg2: memref<1x8x2x32xf32, #tpu.memory_space<vmem>>, %arg3: memref<2x32x32xf32, #tpu.memory_space<any>>, %arg4: memref<1x8x2x32xf32, #tpu.memory_space<vmem>>, %arg5: memref<2x32xf32, #tpu.memory_space<vmem>>, %arg6: memref<32x32xf32, #tpu.memory_space<vmem>>, %arg7: memref<!tpu.dma_semaphore, #tpu.memory_space<semaphore_mem>>) attributes {dimension_semantics = [#tpu.dimension_semantics<parallel>, #tpu.dimension_semantics<arbitrary>], iteration_bounds = array<i64: 2, 1>, scalar_prefetch = 0 : i64, scratch_operands = 3 : i64, tpu.core_type = #tpu.core_type<tc>, window_params = [{transform_indices = @transform_0, window_bounds = array<i64: 1, 8, 2, 32>}, {}, {transform_indices = @transform_2, window_bounds = array<i64: 1, 8, 2, 32>}]} {
    %c0_i32 = arith.constant 0 : i32
    %0 = arith.cmpi eq, %arg1, %c0_i32 : i32
    %1 = arith.extui %0 : i1 to i32
    %c0_i32_0 = arith.constant 0 : i32
    %2 = arith.cmpi ne, %1, %c0_i32_0 : i32
    scf.if %2 {
      %c0_i32_78 = arith.constant 0 : i32
      %c0_i32_79 = arith.constant 0 : i32
      %126 = tpu.memref_slice %arg3[%arg0, %c0_i32_78, %c0_i32_79] : memref<2x32x32xf32, #tpu.memory_space<any>> -> memref<1x32x32xf32, #tpu.memory_space<any>>
      %127 = tpu.memref_squeeze %126 : memref<1x32x32xf32, #tpu.memory_space<any>> -> memref<32x32xf32, #tpu.memory_space<any>>
      tpu.enqueue_dma source(%127 : memref<32x32xf32, #tpu.memory_space<any>>) target(%arg6 : memref<32x32xf32, #tpu.memory_space<vmem>>) target_semaphore(%arg7 : memref<!tpu.dma_semaphore, #tpu.memory_space<semaphore_mem>>)
      %c0_i32_80 = arith.constant 0 : i32
      %c0_i32_81 = arith.constant 0 : i32
      %128 = tpu.memref_slice %arg3[%arg0, %c0_i32_80, %c0_i32_81] : memref<2x32x32xf32, #tpu.memory_space<any>> -> memref<1x32x32xf32, #tpu.memory_space<any>>
      %129 = tpu.memref_squeeze %128 : memref<1x32x32xf32, #tpu.memory_space<any>> -> memref<32x32xf32, #tpu.memory_space<any>>
      tpu.wait_dma2 semaphore(%arg7 : memref<!tpu.dma_semaphore, #tpu.memory_space<semaphore_mem>>) src(%129 : memref<32x32xf32, #tpu.memory_space<any>>) dst(%arg6 : memref<32x32xf32, #tpu.memory_space<vmem>>)
      %cst_82 = arith.constant 0.000000e+00 : f32
      %130 = vector.broadcast %cst_82 : f32 to vector<2x32xf32>
      %c0_83 = arith.constant 0 : index
      %c0_84 = arith.constant 0 : index
      %131 = vector.load %arg5[%c0_83, %c0_84] : memref<2x32xf32, #tpu.memory_space<vmem>>, vector<2x32xf32>
      tpu.vector_store %arg5[%c0_83, %c0_84], %130 {strides = array<i32>} : memref<2x32xf32, #tpu.memory_space<vmem>>, vector<2x32xf32>,
    } else {
    }
    %c0 = arith.constant 0 : index
    %c0_1 = arith.constant 0 : index
    %3 = vector.load %arg6[%c0, %c0_1] : memref<32x32xf32, #tpu.memory_space<vmem>>, vector<32x32xf32>
    %c0_2 = arith.constant 0 : index
    %c0_3 = arith.constant 0 : index
    %4 = vector.load %arg5[%c0_2, %c0_3] : memref<2x32xf32, #tpu.memory_space<vmem>>, vector<2x32xf32>
    %c0_i32_4 = arith.constant 0 : i32
    %c1_i32 = arith.constant 1 : i32
    %5 = arith.subi %c1_i32, %arg0 : i32
    %6 = arith.muli %5, %c0_i32_4 : i32
    %c7_i32 = arith.constant 7 : i32
    %7 = arith.subi %c7_i32, %c0_i32_4 : i32
    %8 = arith.muli %arg0, %7 : i32
    %9 = arith.addi %6, %8 : i32
    %c0_5 = arith.constant 0 : index
    %10 = arith.index_cast %9 : i32 to index
    %c0_6 = arith.constant 0 : index
    %c0_7 = arith.constant 0 : index
    %11 = vector.load %arg2[%c0_5, %10, %c0_6, %c0_7] : memref<1x8x2x32xf32, #tpu.memory_space<vmem>>, vector<1x1x2x32xf32>
    %12 = vector.shape_cast %11 : vector<1x1x2x32xf32> to vector<2x32xf32>
    %cst = arith.constant dense<0.000000e+00> : vector<2x32xf32>
    %13 = tpu.matmul %4, %3, %cst {dimension_numbers = #tpu.dot_dimension_numbers<[1], [0], [0], [1], [0, 0, 1, 1], [], []>} : vector<2x32xf32>, vector<32x32xf32>, vector<2x32xf32> -> vector<2x32xf32>
    %14 = arith.addf %12, %13 : vector<2x32xf32>
    %15 = math.tanh %14 : vector<2x32xf32>
    %c0_8 = arith.constant 0 : index
    %16 = arith.index_cast %9 : i32 to index
    %c0_9 = arith.constant 0 : index
    %c0_10 = arith.constant 0 : index
    %17 = vector.load %arg4[%c0_8, %16, %c0_9, %c0_10] : memref<1x8x2x32xf32, #tpu.memory_space<vmem>>, vector<1x1x2x32xf32>
    %18 = vector.shape_cast %17 : vector<1x1x2x32xf32> to vector<2x32xf32>
    %19 = vector.shape_cast %15 : vector<2x32xf32> to vector<1x1x2x32xf32>
    tpu.vector_store %arg4[%c0_8, %16, %c0_9, %c0_10], %19 {strides = array<i32>} : memref<1x8x2x32xf32, #tpu.memory_space<vmem>>, vector<1x1x2x32xf32>,
    %c1_i32_11 = arith.constant 1 : i32
    %c1_i32_12 = arith.constant 1 : i32
    %20 = arith.subi %c1_i32_12, %arg0 : i32
    %21 = arith.muli %20, %c1_i32_11 : i32
    %c7_i32_13 = arith.constant 7 : i32
    %22 = arith.subi %c7_i32_13, %c1_i32_11 : i32
    %23 = arith.muli %arg0, %22 : i32
    %24 = arith.addi %21, %23 : i32
    %c0_14 = arith.constant 0 : index
    %25 = arith.index_cast %24 : i32 to index
    %c0_15 = arith.constant 0 : index
    %c0_16 = arith.constant 0 : index
    %26 = vector.load %arg2[%c0_14, %25, %c0_15, %c0_16] : memref<1x8x2x32xf32, #tpu.memory_space<vmem>>, vector<1x1x2x32xf32>
    %27 = vector.shape_cast %26 : vector<1x1x2x32xf32> to vector<2x32xf32>
    %cst_17 = arith.constant dense<0.000000e+00> : vector<2x32xf32>
    %28 = tpu.matmul %15, %3, %cst_17 {dimension_numbers = #tpu.dot_dimension_numbers<[1], [0], [0], [1], [0, 0, 1, 1], [], []>} : vector<2x32xf32>, vector<32x32xf32>, vector<2x32xf32> -> vector<2x32xf32>
    %29 = arith.addf %27, %28 : vector<2x32xf32>
    %30 = math.tanh %29 : vector<2x32xf32>
    %c0_18 = arith.constant 0 : index
    %31 = arith.index_cast %24 : i32 to index
    %c0_19 = arith.constant 0 : index
    %c0_20 = arith.constant 0 : index
    %32 = vector.load %arg4[%c0_18, %31, %c0_19, %c0_20] : memref<1x8x2x32xf32, #tpu.memory_space<vmem>>, vector<1x1x2x32xf32>
    %33 = vector.shape_cast %32 : vector<1x1x2x32xf32> to vector<2x32xf32>
    %34 = vector.shape_cast %30 : vector<2x32xf32> to vector<1x1x2x32xf32>
    tpu.vector_store %arg4[%c0_18, %31, %c0_19, %c0_20], %34 {strides = array<i32>} : memref<1x8x2x32xf32, #tpu.memory_space<vmem>>, vector<1x1x2x32xf32>,
    %c2_i32 = arith.constant 2 : i32
    %c1_i32_21 = arith.constant 1 : i32
    %35 = arith.subi %c1_i32_21, %arg0 : i32
    %36 = arith.muli %35, %c2_i32 : i32
    %c7_i32_22 = arith.constant 7 : i32
    %37 = arith.subi %c7_i32_22, %c2_i32 : i32
    %38 = arith.muli %arg0, %37 : i32
    %39 = arith.addi %36, %38 : i32
    %c0_23 = arith.constant 0 : index
    %40 = arith.index_cast %39 : i32 to index
    %c0_24 = arith.constant 0 : index
    %c0_25 = arith.constant 0 : index
    %41 = vector.load %arg2[%c0_23, %40, %c0_24, %c0_25] : memref<1x8x2x32xf32, #tpu.memory_space<vmem>>, vector<1x1x2x32xf32>
    %42 = vector.shape_cast %41 : vector<1x1x2x32xf32> to vector<2x32xf32>
    %cst_26 = arith.constant dense<0.000000e+00> : vector<2x32xf32>
    %43 = tpu.matmul %30, %3, %cst_26 {dimension_numbers = #tpu.dot_dimension_numbers<[1], [0], [0], [1], [0, 0, 1, 1], [], []>} : vector<2x32xf32>, vector<32x32xf32>, vector<2x32xf32> -> vector<2x32xf32>
    %44 = arith.addf %42, %43 : vector<2x32xf32>
    %45 = math.tanh %44 : vector<2x32xf32>
    %c0_27 = arith.constant 0 : index
    %46 = arith.index_cast %39 : i32 to index
    %c0_28 = arith.constant 0 : index
    %c0_29 = arith.constant 0 : index
    %47 = vector.load %arg4[%c0_27, %46, %c0_28, %c0_29] : memref<1x8x2x32xf32, #tpu.memory_space<vmem>>, vector<1x1x2x32xf32>
    %48 = vector.shape_cast %47 : vector<1x1x2x32xf32> to vector<2x32xf32>
    %49 = vector.shape_cast %45 : vector<2x32xf32> to vector<1x1x2x32xf32>
    tpu.vector_store %arg4[%c0_27, %46, %c0_28, %c0_29], %49 {strides = array<i32>} : memref<1x8x2x32xf32, #tpu.memory_space<vmem>>, vector<1x1x2x32xf32>,
    %c3_i32 = arith.constant 3 : i32
    %c1_i32_30 = arith.constant 1 : i32
    %50 = arith.subi %c1_i32_30, %arg0 : i32
    %51 = arith.muli %50, %c3_i32 : i32
    %c7_i32_31 = arith.constant 7 : i32
    %52 = arith.subi %c7_i32_31, %c3_i32 : i32
    %53 = arith.muli %arg0, %52 : i32
    %54 = arith.addi %51, %53 : i32
    %c0_32 = arith.constant 0 : index
    %55 = arith.index_cast %54 : i32 to index
    %c0_33 = arith.constant 0 : index
    %c0_34 = arith.constant 0 : index
    %56 = vector.load %arg2[%c0_32, %55, %c0_33, %c0_34] : memref<1x8x2x32xf32, #tpu.memory_space<vmem>>, vector<1x1x2x32xf32>
    %57 = vector.shape_cast %56 : vector<1x1x2x32xf32> to vector<2x32xf32>
    %cst_35 = arith.constant dense<0.000000e+00> : vector<2x32xf32>
    %58 = tpu.matmul %45, %3, %cst_35 {dimension_numbers = #tpu.dot_dimension_numbers<[1], [0], [0], [1], [0, 0, 1, 1], [], []>} : vector<2x32xf32>, vector<32x32xf32>, vector<2x32xf32> -> vector<2x32xf32>
    %59 = arith.addf %57, %58 : vector<2x32xf32>
    %60 = math.tanh %59 : vector<2x32xf32>
    %c0_36 = arith.constant 0 : index
    %61 = arith.index_cast %54 : i32 to index
    %c0_37 = arith.constant 0 : index
    %c0_38 = arith.constant 0 : index
    %62 = vector.load %arg4[%c0_36, %61, %c0_37, %c0_38] : memref<1x8x2x32xf32, #tpu.memory_space<vmem>>, vector<1x1x2x32xf32>
    %63 = vector.shape_cast %62 : vector<1x1x2x32xf32> to vector<2x32xf32>
    %64 = vector.shape_cast %60 : vector<2x32xf32> to vector<1x1x2x32xf32>
    tpu.vector_store %arg4[%c0_36, %61, %c0_37, %c0_38], %64 {strides = array<i32>} : memref<1x8x2x32xf32, #tpu.memory_space<vmem>>, vector<1x1x2x32xf32>,
    %c4_i32 = arith.constant 4 : i32
    %c1_i32_39 = arith.constant 1 : i32
    %65 = arith.subi %c1_i32_39, %arg0 : i32
    %66 = arith.muli %65, %c4_i32 : i32
    %c7_i32_40 = arith.constant 7 : i32
    %67 = arith.subi %c7_i32_40, %c4_i32 : i32
    %68 = arith.muli %arg0, %67 : i32
    %69 = arith.addi %66, %68 : i32
    %c0_41 = arith.constant 0 : index
    %70 = arith.index_cast %69 : i32 to index
    %c0_42 = arith.constant 0 : index
    %c0_43 = arith.constant 0 : index
    %71 = vector.load %arg2[%c0_41, %70, %c0_42, %c0_43] : memref<1x8x2x32xf32, #tpu.memory_space<vmem>>, vector<1x1x2x32xf32>
    %72 = vector.shape_cast %71 : vector<1x1x2x32xf32> to vector<2x32xf32>
    %cst_44 = arith.constant dense<0.000000e+00> : vector<2x32xf32>
    %73 = tpu.matmul %60, %3, %cst_44 {dimension_numbers = #tpu.dot_dimension_numbers<[1], [0], [0], [1], [0, 0, 1, 1], [], []>} : vector<2x32xf32>, vector<32x32xf32>, vector<2x32xf32> -> vector<2x32xf32>
    %74 = arith.addf %72, %73 : vector<2x32xf32>
    %75 = math.tanh %74 : vector<2x32xf32>
    %c0_45 = arith.constant 0 : index
    %76 = arith.index_cast %69 : i32 to index
    %c0_46 = arith.constant 0 : index
    %c0_47 = arith.constant 0 : index
    %77 = vector.load %arg4[%c0_45, %76, %c0_46, %c0_47] : memref<1x8x2x32xf32, #tpu.memory_space<vmem>>, vector<1x1x2x32xf32>
    %78 = vector.shape_cast %77 : vector<1x1x2x32xf32> to vector<2x32xf32>
    %79 = vector.shape_cast %75 : vector<2x32xf32> to vector<1x1x2x32xf32>
    tpu.vector_store %arg4[%c0_45, %76, %c0_46, %c0_47], %79 {strides = array<i32>} : memref<1x8x2x32xf32, #tpu.memory_space<vmem>>, vector<1x1x2x32xf32>,
    %c5_i32 = arith.constant 5 : i32
    %c1_i32_48 = arith.constant 1 : i32
    %80 = arith.subi %c1_i32_48, %arg0 : i32
    %81 = arith.muli %80, %c5_i32 : i32
    %c7_i32_49 = arith.constant 7 : i32
    %82 = arith.subi %c7_i32_49, %c5_i32 : i32
    %83 = arith.muli %arg0, %82 : i32
    %84 = arith.addi %81, %83 : i32
    %c0_50 = arith.constant 0 : index
    %85 = arith.index_cast %84 : i32 to index
    %c0_51 = arith.constant 0 : index
    %c0_52 = arith.constant 0 : index
    %86 = vector.load %arg2[%c0_50, %85, %c0_51, %c0_52] : memref<1x8x2x32xf32, #tpu.memory_space<vmem>>, vector<1x1x2x32xf32>
    %87 = vector.shape_cast %86 : vector<1x1x2x32xf32> to vector<2x32xf32>
    %cst_53 = arith.constant dense<0.000000e+00> : vector<2x32xf32>
    %88 = tpu.matmul %75, %3, %cst_53 {dimension_numbers = #tpu.dot_dimension_numbers<[1], [0], [0], [1], [0, 0, 1, 1], [], []>} : vector<2x32xf32>, vector<32x32xf32>, vector<2x32xf32> -> vector<2x32xf32>
    %89 = arith.addf %87, %88 : vector<2x32xf32>
    %90 = math.tanh %89 : vector<2x32xf32>
    %c0_54 = arith.constant 0 : index
    %91 = arith.index_cast %84 : i32 to index
    %c0_55 = arith.constant 0 : index
    %c0_56 = arith.constant 0 : index
    %92 = vector.load %arg4[%c0_54, %91, %c0_55, %c0_56] : memref<1x8x2x32xf32, #tpu.memory_space<vmem>>, vector<1x1x2x32xf32>
    %93 = vector.shape_cast %92 : vector<1x1x2x32xf32> to vector<2x32xf32>
    %94 = vector.shape_cast %90 : vector<2x32xf32> to vector<1x1x2x32xf32>
    tpu.vector_store %arg4[%c0_54, %91, %c0_55, %c0_56], %94 {strides = array<i32>} : memref<1x8x2x32xf32, #tpu.memory_space<vmem>>, vector<1x1x2x32xf32>,
    %c6_i32 = arith.constant 6 : i32
    %c1_i32_57 = arith.constant 1 : i32
    %95 = arith.subi %c1_i32_57, %arg0 : i32
    %96 = arith.muli %95, %c6_i32 : i32
    %c7_i32_58 = arith.constant 7 : i32
    %97 = arith.subi %c7_i32_58, %c6_i32 : i32
    %98 = arith.muli %arg0, %97 : i32
    %99 = arith.addi %96, %98 : i32
    %c0_59 = arith.constant 0 : index
    %100 = arith.index_cast %99 : i32 to index
    %c0_60 = arith.constant 0 : index
    %c0_61 = arith.constant 0 : index
    %101 = vector.load %arg2[%c0_59, %100, %c0_60, %c0_61] : memref<1x8x2x32xf32, #tpu.memory_space<vmem>>, vector<1x1x2x32xf32>
    %102 = vector.shape_cast %101 : vector<1x1x2x32xf32> to vector<2x32xf32>
    %cst_62 = arith.constant dense<0.000000e+00> : vector<2x32xf32>
    %103 = tpu.matmul %90, %3, %cst_62 {dimension_numbers = #tpu.dot_dimension_numbers<[1], [0], [0], [1], [0, 0, 1, 1], [], []>} : vector<2x32xf32>, vector<32x32xf32>, vector<2x32xf32> -> vector<2x32xf32>
    %104 = arith.addf %102, %103 : vector<2x32xf32>
    %105 = math.tanh %104 : vector<2x32xf32>
    %c0_63 = arith.constant 0 : index
    %106 = arith.index_cast %99 : i32 to index
    %c0_64 = arith.constant 0 : index
    %c0_65 = arith.constant 0 : index
    %107 = vector.load %arg4[%c0_63, %106, %c0_64, %c0_65] : memref<1x8x2x32xf32, #tpu.memory_space<vmem>>, vector<1x1x2x32xf32>
    %108 = vector.shape_cast %107 : vector<1x1x2x32xf32> to vector<2x32xf32>
    %109 = vector.shape_cast %105 : vector<2x32xf32> to vector<1x1x2x32xf32>
    tpu.vector_store %arg4[%c0_63, %106, %c0_64, %c0_65], %109 {strides = array<i32>} : memref<1x8x2x32xf32, #tpu.memory_space<vmem>>, vector<1x1x2x32xf32>,
    %c7_i32_66 = arith.constant 7 : i32
    %c1_i32_67 = arith.constant 1 : i32
    %110 = arith.subi %c1_i32_67, %arg0 : i32
    %111 = arith.muli %110, %c7_i32_66 : i32
    %c7_i32_68 = arith.constant 7 : i32
    %112 = arith.subi %c7_i32_68, %c7_i32_66 : i32
    %113 = arith.muli %arg0, %112 : i32
    %114 = arith.addi %111, %113 : i32
    %c0_69 = arith.constant 0 : index
    %115 = arith.index_cast %114 : i32 to index
    %c0_70 = arith.constant 0 : index
    %c0_71 = arith.constant 0 : index
    %116 = vector.load %arg2[%c0_69, %115, %c0_70, %c0_71] : memref<1x8x2x32xf32, #tpu.memory_space<vmem>>, vector<1x1x2x32xf32>
    %117 = vector.shape_cast %116 : vector<1x1x2x32xf32> to vector<2x32xf32>
    %cst_72 = arith.constant dense<0.000000e+00> : vector<2x32xf32>
    %118 = tpu.matmul %105, %3, %cst_72 {dimension_numbers = #tpu.dot_dimension_numbers<[1], [0], [0], [1], [0, 0, 1, 1], [], []>} : vector<2x32xf32>, vector<32x32xf32>, vector<2x32xf32> -> vector<2x32xf32>
    %119 = arith.addf %117, %118 : vector<2x32xf32>
    %120 = math.tanh %119 : vector<2x32xf32>
    %c0_73 = arith.constant 0 : index
    %121 = arith.index_cast %114 : i32 to index
    %c0_74 = arith.constant 0 : index
    %c0_75 = arith.constant 0 : index
    %122 = vector.load %arg4[%c0_73, %121, %c0_74, %c0_75] : memref<1x8x2x32xf32, #tpu.memory_space<vmem>>, vector<1x1x2x32xf32>
    %123 = vector.shape_cast %122 : vector<1x1x2x32xf32> to vector<2x32xf32>
    %124 = vector.shape_cast %120 : vector<2x32xf32> to vector<1x1x2x32xf32>
    tpu.vector_store %arg4[%c0_73, %121, %c0_74, %c0_75], %124 {strides = array<i32>} : memref<1x8x2x32xf32, #tpu.memory_space<vmem>>, vector<1x1x2x32xf32>,
    %c8_i32 = arith.constant 8 : i32
    %c0_76 = arith.constant 0 : index
    %c0_77 = arith.constant 0 : index
    %125 = vector.load %arg5[%c0_76, %c0_77] : memref<2x32xf32, #tpu.memory_space<vmem>>, vector<2x32xf32>
    tpu.vector_store %arg5[%c0_76, %c0_77], %120 {strides = array<i32>} : memref<2x32xf32, #tpu.memory_space<vmem>>, vector<2x32xf32>,
    return
  }
  func.func @transform_0(%arg0: i32, %arg1: i32) -> (i32, i32, i32, i32) {
    %c1_i32 = arith.constant 1 : i32
    %0 = arith.subi %c1_i32, %arg0 : i32
    %1 = arith.muli %0, %arg1 : i32
    %c0_i32 = arith.constant 0 : i32
    %2 = arith.subi %c0_i32, %arg1 : i32
    %3 = arith.muli %arg0, %2 : i32
    %4 = arith.addi %1, %3 : i32
    %c0_i32_0 = arith.constant 0 : i32
    %c0_i32_1 = arith.constant 0 : i32
    %c0_i32_2 = arith.constant 0 : i32
    return %arg0, %4, %c0_i32_0, %c0_i32_1 : i32, i32, i32, i32
  }
  func.func @transform_2(%arg0: i32, %arg1: i32) -> (i32, i32, i32, i32) {
    %c1_i32 = arith.constant 1 : i32
    %0 = arith.subi %c1_i32, %arg0 : i32
    %1 = arith.muli %0, %arg1 : i32
    %c0_i32 = arith.constant 0 : i32
    %2 = arith.subi %c0_i32, %arg1 : i32
    %3 = arith.muli %arg0, %2 : i32
    %4 = arith.addi %1, %3 : i32
    %c0_i32_0 = arith.constant 0 : i32
    %c0_i32_1 = arith.constant 0 : i32
    %c0_i32_2 = arith.constant 0 : i32
    return %arg0, %4, %c0_i32_0, %c0_i32_1 : i32, i32, i32, i32
  }
}

</mosaic_0001>

<llo_original>
// kernel: rnn_cudnn_forward.2
$region0: #{rnn_cudnn_forward.2}
  #allocation0 [shape = 'u32[]', space=smem, size = 0x4, offset = 0x4, fixed_abs, tag = 'smem constant byte address 0x4 - core index']
  #allocation1 [shape = 'u32[144,128]{1,0:T(1,128)}', space=vmem, size = 0x12000, scoped, tag = 'internal scratch']
  #allocation2 [shape = 'f32[2,32]{1,0:T(2,128)}', space=vmem, size = 0x400, scoped, tag = 'scratch operand']
  #allocation3 [shape = 'f32[32,32]{1,0:T(8,128)}', space=vmem, size = 0x4000, scoped, tag = 'scratch operand']
  #allocation4 [shape = 's32[1]{0}', space=sflag, size = 0x4, scoped, tag = 'scratch operand']
  #allocation5 [shape = 's32[]', space=sflag, size = 0x4, offset = 0, fixed_abs, tag = 'sflag constant byte address 0x0 - dummy sync flag']
  %s0 = inlined_call_operand.vmem [shape: f32[2,8,2,32], index: 0, kind: input, shape index: {}]
  %s1 = inlined_call_operand.vmem [shape: f32[2,32,32], index: 1, kind: input, shape index: {}]
  %s2 = inlined_call_operand.vmem [shape: f32[2,8,2,32], index: 2, kind: output, shape index: {}]
  %s3 = sld [smem:[#allocation0]]
  $region75: #{rnn_cudnn_forward.2} parent=0
    _
  %s5 = ssub.s32 1, %s3
  %s6 = scalar_select 0, %s5, %s3
  loop: start=0, step=1, limit=4
  $region2: #{rnn_cudnn_forward.2} parent=0 // loop_pre_header
    _
  $region3: #{rnn_cudnn_forward.2} parent=0 // loop_header
    %s8 = sphi 0, %s12
    %p9 = scmp.ge.s32.totalorder %s8, 4
    %s15 = sphi 0, %s27
    %s16 = sphi 0, %s23
    %s17 = sphi 0, %s15
    %s18 = sphi 0, %s16
    %s19 = sphi 0, %s17
    %s20 = sphi 0, %s18
    %s42 = sphi 0, %s44
    %s45 = sphi 0, %s42
    %s46 = sphi 0, %s45
    %s62 = sphi 0, %s46
    %s80 = sphi 0, %s82
    %s83 = sphi 0, %s80
    %s84 = sphi 0, %s83
    %s100 = sphi 0, %s84
  $region4: #{rnn_cudnn_forward.2} parent=0 // loop_header_branch
    %11 = sbr.rel (%p9) target = $region8
  $region5: #{rnn_cudnn_forward.2} parent=0 // loop_body
    %s13 = ssub.s32 %s8, 1
    %s14 = ssub.s32 %s8, 2
    %s21 = sadd.s32 1, %s16
    %p22 = scmp.ge.s32.totalorder %s21, 1
    %s23 = scalar_select %p22, 0, %s21
    %s24 = sadd.s32 1, %s15
    %s25 = scalar_select %p22, %s24, %s15
    %p26 = scmp.ge.s32.totalorder %s25, 2
    %s27 = scalar_select %p26, 0, %s25
    %s28 = ssub.s32 1, %s15
    %s29 = smul.u32 %s28, %s16
    %s30 = ssub.s32 0, %s16
    %s31 = smul.u32 %s15, %s30
    %s32 = sadd.s32 %s29, %s31
    %s33 = ssub.s32 1, %s27
    %s34 = smul.u32 %s33, %s23
    %s35 = ssub.s32 0, %s23
    %s36 = smul.u32 %s27, %s35
    %s37 = sadd.s32 %s34, %s36
    %s38 = ssub.s32 %s15, %s27
    %s39 = ssub.s32 %s32, %s37
    %s40 = sor.u32 %s38, %s39
    %p41 = scmp.eq.s32.totalorder %s40, 0
    %s43 = sadd.s32 %s42, 1
    %s44 = scalar_select %p41, %s42, %s43
    %p47 = pneg %p41
    %p48 = scmp.eq.s32.totalorder %s8, 1
    %p49 = por %p47, %p48
    %p50 = scmp.ne.s32.totalorder %s42, %s45
    %p51 = scmp.eq.s32.totalorder %s8, 0
    %p52 = por %p50, %p51
    %p53 = scmp.ne.s32.totalorder %s42, %s45
    %p54 = scmp.eq.s32.totalorder %s13, 1
    %p55 = por %p53, %p54
    %p56 = scmp.ne.s32.totalorder %s45, %s46
    %p57 = scmp.eq.s32.totalorder %s13, 0
    %p58 = por %p56, %p57
    %p59 = scmp.ne.s32.totalorder %s45, %s46
    %p60 = scmp.eq.s32.totalorder %s14, 1
    %p61 = por %p59, %p60
    %p63 = scmp.ne.s32.totalorder %s46, %s62
    %p64 = scmp.eq.s32.totalorder %s14, 0
    %p65 = por %p63, %p64
    %s66 = ssub.s32 1, %s15
    %s67 = smul.u32 %s66, %s16
    %s68 = ssub.s32 0, %s16
    %s69 = smul.u32 %s15, %s68
    %s70 = sadd.s32 %s67, %s69
    %s71 = ssub.s32 1, %s27
    %s72 = smul.u32 %s71, %s23
    %s73 = ssub.s32 0, %s23
    %s74 = smul.u32 %s27, %s73
    %s75 = sadd.s32 %s72, %s74
    %s76 = ssub.s32 %s15, %s27
    %s77 = ssub.s32 %s70, %s75
    %s78 = sor.u32 %s76, %s77
    %p79 = scmp.eq.s32.totalorder %s78, 0
    %s81 = sadd.s32 %s80, 1
    %s82 = scalar_select %p79, %s80, %s81
    %p85 = pneg %p79
    %p86 = scmp.eq.s32.totalorder %s8, 1
    %p87 = por %p85, %p86
    %p88 = scmp.ne.s32.totalorder %s80, %s83
    %p89 = scmp.eq.s32.totalorder %s8, 0
    %p90 = por %p88, %p89
    %p91 = scmp.ne.s32.totalorder %s80, %s83
    %p92 = scmp.eq.s32.totalorder %s13, 1
    %p93 = por %p91, %p92
    %p94 = scmp.ne.s32.totalorder %s83, %s84
    %p95 = scmp.eq.s32.totalorder %s13, 0
    %p96 = por %p94, %p95
    %p97 = scmp.ne.s32.totalorder %s83, %s84
    %p98 = scmp.eq.s32.totalorder %s14, 1
    %p99 = por %p97, %p98
    %p101 = scmp.ne.s32.totalorder %s84, %s100
    %p102 = scmp.eq.s32.totalorder %s14, 0
    %p103 = por %p101, %p102
    %p104 = scmp.le.s32.totalorder 1, %s8
    %p105 = scmp.lt.s32.totalorder %s8, 3
    %p106 = pnand %p104, %p105
    %p107 = pneg %p106
    // Predicated region
    $region9: #{rnn_cudnn_forward.2} parent=5 // pred_check
      _
    $region10: #{rnn_cudnn_forward.2} parent=5 // pred_check_branch
      %109 = sbr.rel (%p106) target = $region12
    $region11: #{rnn_cudnn_forward.2} parent=5 // pred_region
      %s110 = ssub.s32 %s8, 1
    $region12: #{rnn_cudnn_forward.2} parent=5 // pred_fallthru
      _
    %p111 = scmp.lt.s32.totalorder %s8, 2
    // Predicated region
    $region13: #{rnn_cudnn_forward.2} parent=5 // pred_check
      %p112 = pneg %p111
    $region14: #{rnn_cudnn_forward.2} parent=5 // pred_check_branch
      %114 = sbr.rel (%p112) target = $region16
    $region15: #{rnn_cudnn_forward.2} parent=5 // pred_region
      // Predicated region
      $region17: #{rnn_cudnn_forward.2} parent=15 // pred_check
        %p115 = pneg %p52
      $region18: #{rnn_cudnn_forward.2} parent=15 // pred_check_branch
        %117 = sbr.rel (%p115) target = $region20
      $region19: #{rnn_cudnn_forward.2} parent=15 // pred_region
        %s118 = ssub.s32 1, %s15
        %s119 = smul.u32 %s118, %s16
        %s120 = ssub.s32 0, %s16
        %s121 = smul.u32 %s15, %s120
        %s122 = sadd.s32 %s119, %s121
        %s123 = smul.u32 8, %s122
        %p124 = scmp.lt.s32.totalorder %s15, 1
        %s125 = scalar_select %p124, %s15, 1
        %p126 = scmp.lt.s32.totalorder %s123, 7
        %s127 = scalar_select %p126, %s123, 7
        %s128 = smul.addr %s125, 8
        %s129 = sadd.s32 %s127, %s128
        %s130 = smul.addr %s129, 2
        %s131 = scalar_lea.vmem %s0, %s130
        %s132 = ssub.s32 1, %s15
        %s133 = smul.u32 %s132, %s16
        %s134 = ssub.s32 0, %s16
        %s135 = smul.u32 %s15, %s134
        %s136 = sadd.s32 %s133, %s135
        %s137 = smul.u32 8, %s136
      $region20: #{rnn_cudnn_forward.2} parent=15 // pred_fallthru
        _
    $region16: #{rnn_cudnn_forward.2} parent=5 // pred_fallthru
      _
    %p138 = scmp.le.s32.totalorder 1, %s8
    %p139 = scmp.lt.s32.totalorder %s8, 3
    %p140 = pnand %p138, %p139
    %p141 = pneg %p140
    // Predicated region
    $region21: #{rnn_cudnn_forward.2} parent=5 // pred_check
      _
    $region22: #{rnn_cudnn_forward.2} parent=5 // pred_check_branch
      %143 = sbr.rel (%p140) target = $region24
    $region23: #{rnn_cudnn_forward.2} parent=5 // pred_region
      %s144 = ssub.s32 %s8, 1
      %s145 = ssub.s32 1, %s17
      %s146 = smul.u32 %s145, %s18
      %s147 = ssub.s32 0, %s18
      %s148 = smul.u32 %s17, %s147
      %s149 = sadd.s32 %s146, %s148
      %s150 = smul.u32 8, %s149
      %p151 = scmp.lt.s32.totalorder %s17, 1
      %s152 = scalar_select %p151, %s17, 1
      %p153 = scmp.lt.s32.totalorder %s150, 7
      %s154 = scalar_select %p153, %s150, 7
      %s155 = smul.addr %s152, 8
      %s156 = sadd.s32 %s154, %s155
      %s157 = smul.addr %s156, 2
      %s158 = scalar_lea.vmem %s0, %s157
      %p159 = pneg %p58
      %p160 = pneg %p55
      %p161 = pneg %p96
      %p162 = pneg %p93
      %s163 = ssub.s32 1, %s17
      %s164 = smul.u32 %s163, %s18
      %s165 = ssub.s32 0, %s18
      %s166 = smul.u32 %s17, %s165
      %s167 = sadd.s32 %s164, %s166
      %s168 = smul.u32 8, %s167
      %p169 = scmp.lt.s32.totalorder %s17, 1
      %s170 = scalar_select %p169, %s17, 1
      %p171 = scmp.lt.s32.totalorder %s168, 7
      %s172 = scalar_select %p171, %s168, 7
      %s173 = smul.addr %s170, 8
      %s174 = sadd.s32 %s172, %s173
      %s175 = smul.addr %s174, 2
      %s176 = scalar_lea.vmem %s2, %s175
      %s177 = ssub.s32 1, %s17
      %s178 = smul.u32 %s177, %s18
      %s179 = ssub.s32 0, %s18
      %s180 = smul.u32 %s17, %s179
      %s181 = sadd.s32 %s178, %s180
      %s182 = smul.u32 8, %s181
      %p183 = scmp.lt.s32.totalorder %s17, 1
      %s184 = scalar_select %p183, %s17, 1
      %p185 = scmp.lt.s32.totalorder %s182, 7
      %s186 = scalar_select %p185, %s182, 7
      %s187 = smul.addr %s184, 8
      %s188 = sadd.s32 %s186, %s187
      %s189 = smul.addr %s188, 2
      %s190 = scalar_lea.vmem %s0, %s189
      %s191 = ssub.s32 1, %s17
      %s192 = smul.u32 %s191, %s18
      %s193 = ssub.s32 0, %s18
      %s194 = smul.u32 %s17, %s193
      %s195 = sadd.s32 %s192, %s194
      %s196 = smul.u32 8, %s195
      %s197 = ssub.s32 1, %s17
      %s198 = smul.u32 %s197, %s18
      %s199 = ssub.s32 0, %s18
      %s200 = smul.u32 %s17, %s199
      %s201 = sadd.s32 %s198, %s200
      %s202 = smul.u32 8, %s201
      %p203 = scmp.lt.s32.totalorder %s17, 1
      %s204 = scalar_select %p203, %s17, 1
      %p205 = scmp.lt.s32.totalorder %s202, 7
      %s206 = scalar_select %p205, %s202, 7
      %s207 = smul.addr %s204, 8
      %s208 = sadd.s32 %s206, %s207
      %s209 = smul.addr %s208, 2
      %s210 = scalar_lea.vmem %s2, %s209
      %s211 = ssub.s32 1, %s17
      %s212 = smul.u32 %s211, %s18
      %s213 = ssub.s32 0, %s18
      %s214 = smul.u32 %s17, %s213
      %s215 = sadd.s32 %s212, %s214
      %s216 = smul.u32 8, %s215
      %p217 = scmp.eq.s32.totalorder %s18, 0
      // Predicated region
      $region25: #{rnn_cudnn_forward.2} parent=23 // pred_check
        %p218 = pneg %p217
      $region26: #{rnn_cudnn_forward.2} parent=23 // pred_check_branch
        %220 = sbr.rel (%p218) target = $region28
      $region27: #{rnn_cudnn_forward.2} parent=23 // pred_region
        %s221 = smul.u32 %s17, 32
        %s222 = scalar_lea.vmem %s1, %s221
        %p224 = scmp.lt.u32.totalorder 32, 8
        %p225 = pneg %p224
        // Predicated region
        $region29: #{rnn_cudnn_forward.2} parent=27 // pred_check
          _
        $region30: #{rnn_cudnn_forward.2} parent=27 // pred_check_branch
          %227 = sbr.rel (%p224) target = $region32
        $region31: #{rnn_cudnn_forward.2} parent=27 // pred_region
          %s242 = sand.u32 32, 7
          %p243 = scmp.eq.s32.totalorder %s242, 0
          // Predicated region
          $region44: #{rnn_cudnn_forward.2} parent=31 // pred_check
            %p244 = pneg %p243
          $region45: #{rnn_cudnn_forward.2} parent=31 // pred_check_branch
            %246 = sbr.rel (%p244) target = $region47
          $region46: #{rnn_cudnn_forward.2} parent=31 // pred_region
            loop: start=0, step=1, limit=1
            $region48: #{rnn_cudnn_forward.2} parent=46 // loop_pre_header
              _
            $region49: #{rnn_cudnn_forward.2} parent=46 // loop_header
              %s248 = sphi 0, %s252
              %p249 = scmp.ge.s32.totalorder %s248, 1
              %s253 = sphi %s222, %s222
              %s254 = sphi [#allocation3], [#allocation3]
            $region50: #{rnn_cudnn_forward.2} parent=46 // loop_header_branch
              %251 = sbr.rel (%p249) target = $region54
            $region51: #{rnn_cudnn_forward.2} parent=46 // loop_body
              %v255 = vld [vmem:[%s253] sm:$0xff]
              %256 = vst [vmem:[%s254] sm:$0xff] %v255
              %v257 = vld [vmem:[%s253 + $0x8] sm:$0xff]
              %258 = vst [vmem:[%s254 + $0x8] sm:$0xff] %v257
              %v259 = vld [vmem:[%s253 + $0x10] sm:$0xff]
              %260 = vst [vmem:[%s254 + $0x10] sm:$0xff] %v259
              %v261 = vld [vmem:[%s253 + $0x18] sm:$0xff]
              %262 = vst [vmem:[%s254 + $0x18] sm:$0xff] %v261
            $region52: #{rnn_cudnn_forward.2} parent=46 // loop_footer
              %s252 = sadd.s32 1, %s248
            $region53: #{rnn_cudnn_forward.2} parent=46 // loop_footer_branch
              %247 = sbr.rel target = $region49
            $region54: #{rnn_cudnn_forward.2} parent=46 // loop_exit
              _
          $region47: #{rnn_cudnn_forward.2} parent=31 // pred_fallthru
            _
          %p263 = pneg %p243
          // Predicated region
          $region55: #{rnn_cudnn_forward.2} parent=31 // pred_check
            _
          $region56: #{rnn_cudnn_forward.2} parent=31 // pred_check_branch
            %265 = sbr.rel (%p243) target = $region58
          $region57: #{rnn_cudnn_forward.2} parent=31 // pred_region
            %s266 = sand.u32 32, 7
          $region58: #{rnn_cudnn_forward.2} parent=31 // pred_fallthru
            _
        $region32: #{rnn_cudnn_forward.2} parent=27 // pred_fallthru
          _
        // Predicated region
        $region33: #{rnn_cudnn_forward.2} parent=27 // pred_check
          %p228 = pneg %p224
        $region34: #{rnn_cudnn_forward.2} parent=27 // pred_check_branch
          %230 = sbr.rel (%p228) target = $region36
        $region35: #{rnn_cudnn_forward.2} parent=27 // pred_region
          %s231 = sshllo.u32 0, 32
          loop: start=0, step=1, limit=1
          $region37: #{rnn_cudnn_forward.2} parent=35 // loop_pre_header
            _
          $region38: #{rnn_cudnn_forward.2} parent=35 // loop_header
            %s233 = sphi 0, %s237
            %p234 = scmp.ge.s32.totalorder %s233, 1
            %s238 = sphi %s222, %s222
            %s239 = sphi [#allocation3], [#allocation3]
          $region39: #{rnn_cudnn_forward.2} parent=35 // loop_header_branch
            %236 = sbr.rel (%p234) target = $region43
          $region40: #{rnn_cudnn_forward.2} parent=35 // loop_body
            %v240 = vld [vmem:[%s238] sm:%s231]
            %241 = vst [vmem:[%s239] sm:%s231] %v240
          $region41: #{rnn_cudnn_forward.2} parent=35 // loop_footer
            %s237 = sadd.s32 1, %s233
          $region42: #{rnn_cudnn_forward.2} parent=35 // loop_footer_branch
            %232 = sbr.rel target = $region38
          $region43: #{rnn_cudnn_forward.2} parent=35 // loop_exit
            _
        $region36: #{rnn_cudnn_forward.2} parent=27 // pred_fallthru
          _
        // Predicated region
        $region59: #{rnn_cudnn_forward.2} parent=27 // pred_check
          _
        $region60: #{rnn_cudnn_forward.2} parent=27 // pred_check_branch
          %269 = sbr.rel (0) target = $region62
        $region61: #{rnn_cudnn_forward.2} parent=27 // pred_region
          %270 = vsyncadd [#allocation4], 512
        $region62: #{rnn_cudnn_forward.2} parent=27 // pred_fallthru
          _
        %s271 = smul.u32 32, 1
        %s272 = sshll.u32 %s271, 4
        %273 = dma.done [#allocation4], %s272
        %vm274 = vcmask 254976
        %275 = vst.msk [vmem:[#allocation2] sm:$0x3] %vm274, 0.0
      $region28: #{rnn_cudnn_forward.2} parent=23 // pred_fallthru
        _
      %v276 = vld [vmem:[#allocation3] sm:$0xff]
      %v277 = vld [vmem:[#allocation3 + $0x8] sm:$0xff]
      %v278 = vld [vmem:[#allocation3 + $0x10] sm:$0xff]
      %v279 = vld [vmem:[#allocation3 + $0x18] sm:$0xff]
      %v280 = vld [vmem:[#allocation2] sm:$0x3]
      %s281 = smul.u32 %s17, 7
      %s282 = smul.u32 %s281, 2
      %s283 = scalar_lea.vmem %s190, %s282
      %v284 = vld [vmem:[%s283] sm:$0x3]
      %vm285 = vcmask 261120
      %v287 = vsel %vm285, %v280, 0
      %289 = vmatprep.subr.mxu0 0.0
      %290 = vmatpush1.msra.mxu0 %v276
      %291 = vmatprep.subr.mxu0 0.0
      %292 = vmatpush1.msra.mxu0 %v277
      %293 = vmatprep.subr.mxu0 0.0
      %294 = vmatpush1.msra.mxu0 %v278
      %295 = vmatprep.subr.mxu0 0.0
      %296 = vmatpush1.msra.mxu0 %v279
      %297 = vmatprep.subr.mxu0 0.0
      %298 = vmatpush1.msra.mxu0 0.0
      %299 = vmatprep.subr.mxu0 0.0
      %300 = vmatpush1.msra.mxu0 0.0
      %301 = vmatprep.subr.mxu0 0.0
      %302 = vmatpush1.msra.mxu0 0.0
      %303 = vmatprep.subr.mxu0 0.0
      %304 = vmatpush1.msra.mxu0 0.0
      %305 = vmatprep.subr.mxu0 0.0
      %306 = vmatpush1.msra.mxu0 0.0
      %307 = vmatprep.subr.mxu0 0.0
      %308 = vmatpush1.msra.mxu0 0.0
      %309 = vmatprep.subr.mxu0 0.0
      %310 = vmatpush1.msra.mxu0 0.0
      %311 = vmatprep.subr.mxu0 0.0
      %312 = vmatpush1.msra.mxu0 0.0
      %313 = vmatprep.subr.mxu0 0.0
      %314 = vmatpush1.msra.mxu0 0.0
      %315 = vmatprep.subr.mxu0 0.0
      %316 = vmatpush1.msra.mxu0 0.0
      %317 = vmatprep.subr.mxu0 0.0
      %318 = vmatpush1.msra.mxu0 0.0
      %319 = vmatprep.subr.mxu0 0.0
      %320 = vmatpush1.msra.mxu0 0.0
      %321 = vmatprep.subr.mxu0 0.0
      %322 = vmatpush1.msra.mxu0 0.0
      %323 = vmatprep.subr.mxu0 0.0
      %324 = vmatpush1.msra.mxu0 0.0
      %325 = vmatprep.subr.mxu0 0.0
      %326 = vmatpush1.msra.mxu0 0.0
      %327 = vmatprep.subr.mxu0 0.0
      %328 = vmatpush1.msra.mxu0 0.0
      %329 = vmatprep.subr.mxu0 0.0
      %330 = vmatpush1.msra.mxu0 0.0
      %331 = vmatprep.subr.mxu0 0.0
      %332 = vmatpush1.msra.mxu0 0.0
      %333 = vmatprep.subr.mxu0 0.0
      %334 = vmatpush1.msra.mxu0 0.0
      %335 = vmatprep.subr.mxu0 0.0
      %336 = vmatpush1.msra.mxu0 0.0
      %337 = vmatprep.subr.mxu0 0.0
      %338 = vmatpush1.msra.mxu0 0.0
      %339 = vmatprep.subr.mxu0 0.0
      %340 = vmatpush1.msra.mxu0 0.0
      %341 = vmatprep.subr.mxu0 0.0
      %342 = vmatpush1.msra.mxu0 0.0
      %343 = vmatprep.subr.mxu0 0.0
      %344 = vmatpush1.msra.mxu0 0.0
      %345 = vmatprep.subr.mxu0 0.0
      %346 = vmatpush1.msra.mxu0 0.0
      %347 = vmatprep.subr.mxu0 0.0
      %348 = vmatpush1.msra.mxu0 0.0
      %349 = vmatprep.subr.mxu0 0.0
      %350 = vmatpush1.msra.mxu0 0.0
      %351 = vmatprep.subr.mxu0 0.0
      %352 = vmatpush1.msra.mxu0 0.0
      %353 = vmatprep.mubr.f32.mxu0 0.0
      %354 = vmatmul.mubr.f32.gmra.mrb[0].mxu0 %v287
      %v355 = vpop.f32.mrb[0].mxu0
      %v356 = vadd.f32 0.0, %v355
      %v357 = vpop.f32.mrb[0].mxu0
      %358 = vdwg.mxu0
      %v359 = vadd.f32 %v284, %v356
      %v360 = vtanh.pop %v359
      %s361 = scalar_lea.vmem %s210, %s282
      %vm362 = vcmask 254976
      %363 = vst.msk [vmem:[%s361] sm:$0x3] %vm362, %v360
      %s364 = ssub.s32 1, %s17
      %s365 = smul.u32 %s17, 6
      %s366 = sadd.s32 %s364, %s365
      %s367 = smul.u32 %s366, 2
      %s368 = scalar_lea.vmem %s190, %s367
      %v369 = vld [vmem:[%s368] sm:$0x3]
      %v371 = vsel %vm285, %v360, 0
      %373 = vmatprep.subr.mxu0 0.0
      %374 = vmatpush1.msra.mxu0 %v276
      %375 = vmatprep.subr.mxu0 0.0
      %376 = vmatpush1.msra.mxu0 %v277
      %377 = vmatprep.subr.mxu0 0.0
      %378 = vmatpush1.msra.mxu0 %v278
      %379 = vmatprep.subr.mxu0 0.0
      %380 = vmatpush1.msra.mxu0 %v279
      %381 = vmatprep.subr.mxu0 0.0
      %382 = vmatpush1.msra.mxu0 0.0
      %383 = vmatprep.subr.mxu0 0.0
      %384 = vmatpush1.msra.mxu0 0.0
      %385 = vmatprep.subr.mxu0 0.0
      %386 = vmatpush1.msra.mxu0 0.0
      %387 = vmatprep.subr.mxu0 0.0
      %388 = vmatpush1.msra.mxu0 0.0
      %389 = vmatprep.subr.mxu0 0.0
      %390 = vmatpush1.msra.mxu0 0.0
      %391 = vmatprep.subr.mxu0 0.0
      %392 = vmatpush1.msra.mxu0 0.0
      %393 = vmatprep.subr.mxu0 0.0
      %394 = vmatpush1.msra.mxu0 0.0
      %395 = vmatprep.subr.mxu0 0.0
      %396 = vmatpush1.msra.mxu0 0.0
      %397 = vmatprep.subr.mxu0 0.0
      %398 = vmatpush1.msra.mxu0 0.0
      %399 = vmatprep.subr.mxu0 0.0
      %400 = vmatpush1.msra.mxu0 0.0
      %401 = vmatprep.subr.mxu0 0.0
      %402 = vmatpush1.msra.mxu0 0.0
      %403 = vmatprep.subr.mxu0 0.0
      %404 = vmatpush1.msra.mxu0 0.0
      %405 = vmatprep.subr.mxu0 0.0
      %406 = vmatpush1.msra.mxu0 0.0
      %407 = vmatprep.subr.mxu0 0.0
      %408 = vmatpush1.msra.mxu0 0.0
      %409 = vmatprep.subr.mxu0 0.0
      %410 = vmatpush1.msra.mxu0 0.0
      %411 = vmatprep.subr.mxu0 0.0
      %412 = vmatpush1.msra.mxu0 0.0
      %413 = vmatprep.subr.mxu0 0.0
      %414 = vmatpush1.msra.mxu0 0.0
      %415 = vmatprep.subr.mxu0 0.0
      %416 = vmatpush1.msra.mxu0 0.0
      %417 = vmatprep.subr.mxu0 0.0
      %418 = vmatpush1.msra.mxu0 0.0
      %419 = vmatprep.subr.mxu0 0.0
      %420 = vmatpush1.msra.mxu0 0.0
      %421 = vmatprep.subr.mxu0 0.0
      %422 = vmatpush1.msra.mxu0 0.0
      %423 = vmatprep.subr.mxu0 0.0
      %424 = vmatpush1.msra.mxu0 0.0
      %425 = vmatprep.subr.mxu0 0.0
      %426 = vmatpush1.msra.mxu0 0.0
      %427 = vmatprep.subr.mxu0 0.0
      %428 = vmatpush1.msra.mxu0 0.0
      %429 = vmatprep.subr.mxu0 0.0
      %430 = vmatpush1.msra.mxu0 0.0
      %431 = vmatprep.subr.mxu0 0.0
      %432 = vmatpush1.msra.mxu0 0.0
      %433 = vmatprep.subr.mxu0 0.0
      %434 = vmatpush1.msra.mxu0 0.0
      %435 = vmatprep.subr.mxu0 0.0
      %436 = vmatpush1.msra.mxu0 0.0
      %437 = vmatprep.mubr.f32.mxu0 0.0
      %438 = vmatmul.mubr.f32.gmra.mrb[0].mxu0 %v371
      %v439 = vpop.f32.mrb[0].mxu0
      %v440 = vadd.f32 0.0, %v439
      %v441 = vpop.f32.mrb[0].mxu0
      %442 = vdwg.mxu0
      %v443 = vadd.f32 %v369, %v440
      %v444 = vtanh.pop %v443
      %s445 = scalar_lea.vmem %s210, %s367
      %446 = vst.msk [vmem:[%s445] sm:$0x3] %vm362, %v444
      %s447 = smul.u32 %s364, 2
      %s448 = smul.u32 %s17, 5
      %s449 = sadd.s32 %s447, %s448
      %s450 = smul.u32 %s449, 2
      %s451 = scalar_lea.vmem %s190, %s450
      %v452 = vld [vmem:[%s451] sm:$0x3]
      %v454 = vsel %vm285, %v444, 0
      %456 = vmatprep.subr.mxu0 0.0
      %457 = vmatpush1.msra.mxu0 %v276
      %458 = vmatprep.subr.mxu0 0.0
      %459 = vmatpush1.msra.mxu0 %v277
      %460 = vmatprep.subr.mxu0 0.0
      %461 = vmatpush1.msra.mxu0 %v278
      %462 = vmatprep.subr.mxu0 0.0
      %463 = vmatpush1.msra.mxu0 %v279
      %464 = vmatprep.subr.mxu0 0.0
      %465 = vmatpush1.msra.mxu0 0.0
      %466 = vmatprep.subr.mxu0 0.0
      %467 = vmatpush1.msra.mxu0 0.0
      %468 = vmatprep.subr.mxu0 0.0
      %469 = vmatpush1.msra.mxu0 0.0
      %470 = vmatprep.subr.mxu0 0.0
      %471 = vmatpush1.msra.mxu0 0.0
      %472 = vmatprep.subr.mxu0 0.0
      %473 = vmatpush1.msra.mxu0 0.0
      %474 = vmatprep.subr.mxu0 0.0
      %475 = vmatpush1.msra.mxu0 0.0
      %476 = vmatprep.subr.mxu0 0.0
      %477 = vmatpush1.msra.mxu0 0.0
      %478 = vmatprep.subr.mxu0 0.0
      %479 = vmatpush1.msra.mxu0 0.0
      %480 = vmatprep.subr.mxu0 0.0
      %481 = vmatpush1.msra.mxu0 0.0
      %482 = vmatprep.subr.mxu0 0.0
      %483 = vmatpush1.msra.mxu0 0.0
      %484 = vmatprep.subr.mxu0 0.0
      %485 = vmatpush1.msra.mxu0 0.0
      %486 = vmatprep.subr.mxu0 0.0
      %487 = vmatpush1.msra.mxu0 0.0
      %488 = vmatprep.subr.mxu0 0.0
      %489 = vmatpush1.msra.mxu0 0.0
      %490 = vmatprep.subr.mxu0 0.0
      %491 = vmatpush1.msra.mxu0 0.0
      %492 = vmatprep.subr.mxu0 0.0
      %493 = vmatpush1.msra.mxu0 0.0
      %494 = vmatprep.subr.mxu0 0.0
      %495 = vmatpush1.msra.mxu0 0.0
      %496 = vmatprep.subr.mxu0 0.0
      %497 = vmatpush1.msra.mxu0 0.0
      %498 = vmatprep.subr.mxu0 0.0
      %499 = vmatpush1.msra.mxu0 0.0
      %500 = vmatprep.subr.mxu0 0.0
      %501 = vmatpush1.msra.mxu0 0.0
      %502 = vmatprep.subr.mxu0 0.0
      %503 = vmatpush1.msra.mxu0 0.0
      %504 = vmatprep.subr.mxu0 0.0
      %505 = vmatpush1.msra.mxu0 0.0
      %506 = vmatprep.subr.mxu0 0.0
      %507 = vmatpush1.msra.mxu0 0.0
      %508 = vmatprep.subr.mxu0 0.0
      %509 = vmatpush1.msra.mxu0 0.0
      %510 = vmatprep.subr.mxu0 0.0
      %511 = vmatpush1.msra.mxu0 0.0
      %512 = vmatprep.subr.mxu0 0.0
      %513 = vmatpush1.msra.mxu0 0.0
      %514 = vmatprep.subr.mxu0 0.0
      %515 = vmatpush1.msra.mxu0 0.0
      %516 = vmatprep.subr.mxu0 0.0
      %517 = vmatpush1.msra.mxu0 0.0
      %518 = vmatprep.subr.mxu0 0.0
      %519 = vmatpush1.msra.mxu0 0.0
      %520 = vmatprep.mubr.f32.mxu0 0.0
      %521 = vmatmul.mubr.f32.gmra.mrb[0].mxu0 %v454
      %v522 = vpop.f32.mrb[0].mxu0
      %v523 = vadd.f32 0.0, %v522
      %v524 = vpop.f32.mrb[0].mxu0
      %525 = vdwg.mxu0
      %v526 = vadd.f32 %v452, %v523
      %v527 = vtanh.pop %v526
      %s528 = scalar_lea.vmem %s210, %s450
      %529 = vst.msk [vmem:[%s528] sm:$0x3] %vm362, %v527
      %s530 = smul.u32 %s364, 3
      %s531 = smul.u32 %s17, 4
      %s532 = sadd.s32 %s530, %s531
      %s533 = smul.u32 %s532, 2
      %s534 = scalar_lea.vmem %s190, %s533
      %v535 = vld [vmem:[%s534] sm:$0x3]
      %v537 = vsel %vm285, %v527, 0
      %539 = vmatprep.subr.mxu0 0.0
      %540 = vmatpush1.msra.mxu0 %v276
      %541 = vmatprep.subr.mxu0 0.0
      %542 = vmatpush1.msra.mxu0 %v277
      %543 = vmatprep.subr.mxu0 0.0
      %544 = vmatpush1.msra.mxu0 %v278
      %545 = vmatprep.subr.mxu0 0.0
      %546 = vmatpush1.msra.mxu0 %v279
      %547 = vmatprep.subr.mxu0 0.0
      %548 = vmatpush1.msra.mxu0 0.0
      %549 = vmatprep.subr.mxu0 0.0
      %550 = vmatpush1.msra.mxu0 0.0
      %551 = vmatprep.subr.mxu0 0.0
      %552 = vmatpush1.msra.mxu0 0.0
      %553 = vmatprep.subr.mxu0 0.0
      %554 = vmatpush1.msra.mxu0 0.0
      %555 = vmatprep.subr.mxu0 0.0
      %556 = vmatpush1.msra.mxu0 0.0
      %557 = vmatprep.subr.mxu0 0.0
      %558 = vmatpush1.msra.mxu0 0.0
      %559 = vmatprep.subr.mxu0 0.0
      %560 = vmatpush1.msra.mxu0 0.0
      %561 = vmatprep.subr.mxu0 0.0
      %562 = vmatpush1.msra.mxu0 0.0
      %563 = vmatprep.subr.mxu0 0.0
      %564 = vmatpush1.msra.mxu0 0.0
      %565 = vmatprep.subr.mxu0 0.0
      %566 = vmatpush1.msra.mxu0 0.0
      %567 = vmatprep.subr.mxu0 0.0
      %568 = vmatpush1.msra.mxu0 0.0
      %569 = vmatprep.subr.mxu0 0.0
      %570 = vmatpush1.msra.mxu0 0.0
      %571 = vmatprep.subr.mxu0 0.0
      %572 = vmatpush1.msra.mxu0 0.0
      %573 = vmatprep.subr.mxu0 0.0
      %574 = vmatpush1.msra.mxu0 0.0
      %575 = vmatprep.subr.mxu0 0.0
      %576 = vmatpush1.msra.mxu0 0.0
      %577 = vmatprep.subr.mxu0 0.0
      %578 = vmatpush1.msra.mxu0 0.0
      %579 = vmatprep.subr.mxu0 0.0
      %580 = vmatpush1.msra.mxu0 0.0
      %581 = vmatprep.subr.mxu0 0.0
      %582 = vmatpush1.msra.mxu0 0.0
      %583 = vmatprep.subr.mxu0 0.0
      %584 = vmatpush1.msra.mxu0 0.0
      %585 = vmatprep.subr.mxu0 0.0
      %586 = vmatpush1.msra.mxu0 0.0
      %587 = vmatprep.subr.mxu0 0.0
      %588 = vmatpush1.msra.mxu0 0.0
      %589 = vmatprep.subr.mxu0 0.0
      %590 = vmatpush1.msra.mxu0 0.0
      %591 = vmatprep.subr.mxu0 0.0
      %592 = vmatpush1.msra.mxu0 0.0
      %593 = vmatprep.subr.mxu0 0.0
      %594 = vmatpush1.msra.mxu0 0.0
      %595 = vmatprep.subr.mxu0 0.0
      %596 = vmatpush1.msra.mxu0 0.0
      %597 = vmatprep.subr.mxu0 0.0
      %598 = vmatpush1.msra.mxu0 0.0
      %599 = vmatprep.subr.mxu0 0.0
      %600 = vmatpush1.msra.mxu0 0.0
      %601 = vmatprep.subr.mxu0 0.0
      %602 = vmatpush1.msra.mxu0 0.0
      %603 = vmatprep.mubr.f32.mxu0 0.0
      %604 = vmatmul.mubr.f32.gmra.mrb[0].mxu0 %v537
      %v605 = vpop.f32.mrb[0].mxu0
      %v606 = vadd.f32 0.0, %v605
      %v607 = vpop.f32.mrb[0].mxu0
      %608 = vdwg.mxu0
      %v609 = vadd.f32 %v535, %v606
      %v610 = vtanh.pop %v609
      %s611 = scalar_lea.vmem %s210, %s533
      %612 = vst.msk [vmem:[%s611] sm:$0x3] %vm362, %v610
      %s613 = smul.u32 %s364, 4
      %s614 = smul.u32 %s17, 3
      %s615 = sadd.s32 %s613, %s614
      %s616 = smul.u32 %s615, 2
      %s617 = scalar_lea.vmem %s190, %s616
      %v618 = vld [vmem:[%s617] sm:$0x3]
      %v620 = vsel %vm285, %v610, 0
      %622 = vmatprep.subr.mxu0 0.0
      %623 = vmatpush1.msra.mxu0 %v276
      %624 = vmatprep.subr.mxu0 0.0
      %625 = vmatpush1.msra.mxu0 %v277
      %626 = vmatprep.subr.mxu0 0.0
      %627 = vmatpush1.msra.mxu0 %v278
      %628 = vmatprep.subr.mxu0 0.0
      %629 = vmatpush1.msra.mxu0 %v279
      %630 = vmatprep.subr.mxu0 0.0
      %631 = vmatpush1.msra.mxu0 0.0
      %632 = vmatprep.subr.mxu0 0.0
      %633 = vmatpush1.msra.mxu0 0.0
      %634 = vmatprep.subr.mxu0 0.0
      %635 = vmatpush1.msra.mxu0 0.0
      %636 = vmatprep.subr.mxu0 0.0
      %637 = vmatpush1.msra.mxu0 0.0
      %638 = vmatprep.subr.mxu0 0.0
      %639 = vmatpush1.msra.mxu0 0.0
      %640 = vmatprep.subr.mxu0 0.0
      %641 = vmatpush1.msra.mxu0 0.0
      %642 = vmatprep.subr.mxu0 0.0
      %643 = vmatpush1.msra.mxu0 0.0
      %644 = vmatprep.subr.mxu0 0.0
      %645 = vmatpush1.msra.mxu0 0.0
      %646 = vmatprep.subr.mxu0 0.0
      %647 = vmatpush1.msra.mxu0 0.0
      %648 = vmatprep.subr.mxu0 0.0
      %649 = vmatpush1.msra.mxu0 0.0
      %650 = vmatprep.subr.mxu0 0.0
      %651 = vmatpush1.msra.mxu0 0.0
      %652 = vmatprep.subr.mxu0 0.0
      %653 = vmatpush1.msra.mxu0 0.0
      %654 = vmatprep.subr.mxu0 0.0
      %655 = vmatpush1.msra.mxu0 0.0
      %656 = vmatprep.subr.mxu0 0.0
      %657 = vmatpush1.msra.mxu0 0.0
      %658 = vmatprep.subr.mxu0 0.0
      %659 = vmatpush1.msra.mxu0 0.0
      %660 = vmatprep.subr.mxu0 0.0
      %661 = vmatpush1.msra.mxu0 0.0
      %662 = vmatprep.subr.mxu0 0.0
      %663 = vmatpush1.msra.mxu0 0.0
      %664 = vmatprep.subr.mxu0 0.0
      %665 = vmatpush1.msra.mxu0 0.0
      %666 = vmatprep.subr.mxu0 0.0
      %667 = vmatpush1.msra.mxu0 0.0
      %668 = vmatprep.subr.mxu0 0.0
      %669 = vmatpush1.msra.mxu0 0.0
      %670 = vmatprep.subr.mxu0 0.0
      %671 = vmatpush1.msra.mxu0 0.0
      %672 = vmatprep.subr.mxu0 0.0
      %673 = vmatpush1.msra.mxu0 0.0
      %674 = vmatprep.subr.mxu0 0.0
      %675 = vmatpush1.msra.mxu0 0.0
      %676 = vmatprep.subr.mxu0 0.0
      %677 = vmatpush1.msra.mxu0 0.0
      %678 = vmatprep.subr.mxu0 0.0
      %679 = vmatpush1.msra.mxu0 0.0
      %680 = vmatprep.subr.mxu0 0.0
      %681 = vmatpush1.msra.mxu0 0.0
      %682 = vmatprep.subr.mxu0 0.0
      %683 = vmatpush1.msra.mxu0 0.0
      %684 = vmatprep.subr.mxu0 0.0
      %685 = vmatpush1.msra.mxu0 0.0
      %686 = vmatprep.mubr.f32.mxu0 0.0
      %687 = vmatmul.mubr.f32.gmra.mrb[0].mxu0 %v620
      %v688 = vpop.f32.mrb[0].mxu0
      %v689 = vadd.f32 0.0, %v688
      %v690 = vpop.f32.mrb[0].mxu0
      %691 = vdwg.mxu0
      %v692 = vadd.f32 %v618, %v689
      %v693 = vtanh.pop %v692
      %s694 = scalar_lea.vmem %s210, %s616
      %695 = vst.msk [vmem:[%s694] sm:$0x3] %vm362, %v693
      %s696 = smul.u32 %s364, 5
      %s697 = smul.u32 %s17, 2
      %s698 = sadd.s32 %s696, %s697
      %s699 = smul.u32 %s698, 2
      %s700 = scalar_lea.vmem %s190, %s699
      %v701 = vld [vmem:[%s700] sm:$0x3]
      %v703 = vsel %vm285, %v693, 0
      %705 = vmatprep.subr.mxu0 0.0
      %706 = vmatpush1.msra.mxu0 %v276
      %707 = vmatprep.subr.mxu0 0.0
      %708 = vmatpush1.msra.mxu0 %v277
      %709 = vmatprep.subr.mxu0 0.0
      %710 = vmatpush1.msra.mxu0 %v278
      %711 = vmatprep.subr.mxu0 0.0
      %712 = vmatpush1.msra.mxu0 %v279
      %713 = vmatprep.subr.mxu0 0.0
      %714 = vmatpush1.msra.mxu0 0.0
      %715 = vmatprep.subr.mxu0 0.0
      %716 = vmatpush1.msra.mxu0 0.0
      %717 = vmatprep.subr.mxu0 0.0
      %718 = vmatpush1.msra.mxu0 0.0
      %719 = vmatprep.subr.mxu0 0.0
      %720 = vmatpush1.msra.mxu0 0.0
      %721 = vmatprep.subr.mxu0 0.0
      %722 = vmatpush1.msra.mxu0 0.0
      %723 = vmatprep.subr.mxu0 0.0
      %724 = vmatpush1.msra.mxu0 0.0
      %725 = vmatprep.subr.mxu0 0.0
      %726 = vmatpush1.msra.mxu0 0.0
      %727 = vmatprep.subr.mxu0 0.0
      %728 = vmatpush1.msra.mxu0 0.0
      %729 = vmatprep.subr.mxu0 0.0
      %730 = vmatpush1.msra.mxu0 0.0
      %731 = vmatprep.subr.mxu0 0.0
      %732 = vmatpush1.msra.mxu0 0.0
      %733 = vmatprep.subr.mxu0 0.0
      %734 = vmatpush1.msra.mxu0 0.0
      %735 = vmatprep.subr.mxu0 0.0
      %736 = vmatpush1.msra.mxu0 0.0
      %737 = vmatprep.subr.mxu0 0.0
      %738 = vmatpush1.msra.mxu0 0.0
      %739 = vmatprep.subr.mxu0 0.0
      %740 = vmatpush1.msra.mxu0 0.0
      %741 = vmatprep.subr.mxu0 0.0
      %742 = vmatpush1.msra.mxu0 0.0
      %743 = vmatprep.subr.mxu0 0.0
      %744 = vmatpush1.msra.mxu0 0.0
      %745 = vmatprep.subr.mxu0 0.0
      %746 = vmatpush1.msra.mxu0 0.0
      %747 = vmatprep.subr.mxu0 0.0
      %748 = vmatpush1.msra.mxu0 0.0
      %749 = vmatprep.subr.mxu0 0.0
      %750 = vmatpush1.msra.mxu0 0.0
      %751 = vmatprep.subr.mxu0 0.0
      %752 = vmatpush1.msra.mxu0 0.0
      %753 = vmatprep.subr.mxu0 0.0
      %754 = vmatpush1.msra.mxu0 0.0
      %755 = vmatprep.subr.mxu0 0.0
      %756 = vmatpush1.msra.mxu0 0.0
      %757 = vmatprep.subr.mxu0 0.0
      %758 = vmatpush1.msra.mxu0 0.0
      %759 = vmatprep.subr.mxu0 0.0
      %760 = vmatpush1.msra.mxu0 0.0
      %761 = vmatprep.subr.mxu0 0.0
      %762 = vmatpush1.msra.mxu0 0.0
      %763 = vmatprep.subr.mxu0 0.0
      %764 = vmatpush1.msra.mxu0 0.0
      %765 = vmatprep.subr.mxu0 0.0
      %766 = vmatpush1.msra.mxu0 0.0
      %767 = vmatprep.subr.mxu0 0.0
      %768 = vmatpush1.msra.mxu0 0.0
      %769 = vmatprep.mubr.f32.mxu0 0.0
      %770 = vmatmul.mubr.f32.gmra.mrb[0].mxu0 %v703
      %v771 = vpop.f32.mrb[0].mxu0
      %v772 = vadd.f32 0.0, %v771
      %v773 = vpop.f32.mrb[0].mxu0
      %774 = vdwg.mxu0
      %v775 = vadd.f32 %v701, %v772
      %v776 = vtanh.pop %v775
      %s777 = scalar_lea.vmem %s210, %s699
      %778 = vst.msk [vmem:[%s777] sm:$0x3] %vm362, %v776
      %s779 = smul.u32 %s364, 6
      %s780 = sadd.s32 %s779, %s17
      %s781 = smul.u32 %s780, 2
      %s782 = scalar_lea.vmem %s190, %s781
      %v783 = vld [vmem:[%s782] sm:$0x3]
      %v785 = vsel %vm285, %v776, 0
      %787 = vmatprep.subr.mxu0 0.0
      %788 = vmatpush1.msra.mxu0 %v276
      %789 = vmatprep.subr.mxu0 0.0
      %790 = vmatpush1.msra.mxu0 %v277
      %791 = vmatprep.subr.mxu0 0.0
      %792 = vmatpush1.msra.mxu0 %v278
      %793 = vmatprep.subr.mxu0 0.0
      %794 = vmatpush1.msra.mxu0 %v279
      %795 = vmatprep.subr.mxu0 0.0
      %796 = vmatpush1.msra.mxu0 0.0
      %797 = vmatprep.subr.mxu0 0.0
      %798 = vmatpush1.msra.mxu0 0.0
      %799 = vmatprep.subr.mxu0 0.0
      %800 = vmatpush1.msra.mxu0 0.0
      %801 = vmatprep.subr.mxu0 0.0
      %802 = vmatpush1.msra.mxu0 0.0
      %803 = vmatprep.subr.mxu0 0.0
      %804 = vmatpush1.msra.mxu0 0.0
      %805 = vmatprep.subr.mxu0 0.0
      %806 = vmatpush1.msra.mxu0 0.0
      %807 = vmatprep.subr.mxu0 0.0
      %808 = vmatpush1.msra.mxu0 0.0
      %809 = vmatprep.subr.mxu0 0.0
      %810 = vmatpush1.msra.mxu0 0.0
      %811 = vmatprep.subr.mxu0 0.0
      %812 = vmatpush1.msra.mxu0 0.0
      %813 = vmatprep.subr.mxu0 0.0
      %814 = vmatpush1.msra.mxu0 0.0
      %815 = vmatprep.subr.mxu0 0.0
      %816 = vmatpush1.msra.mxu0 0.0
      %817 = vmatprep.subr.mxu0 0.0
      %818 = vmatpush1.msra.mxu0 0.0
      %819 = vmatprep.subr.mxu0 0.0
      %820 = vmatpush1.msra.mxu0 0.0
      %821 = vmatprep.subr.mxu0 0.0
      %822 = vmatpush1.msra.mxu0 0.0
      %823 = vmatprep.subr.mxu0 0.0
      %824 = vmatpush1.msra.mxu0 0.0
      %825 = vmatprep.subr.mxu0 0.0
      %826 = vmatpush1.msra.mxu0 0.0
      %827 = vmatprep.subr.mxu0 0.0
      %828 = vmatpush1.msra.mxu0 0.0
      %829 = vmatprep.subr.mxu0 0.0
      %830 = vmatpush1.msra.mxu0 0.0
      %831 = vmatprep.subr.mxu0 0.0
      %832 = vmatpush1.msra.mxu0 0.0
      %833 = vmatprep.subr.mxu0 0.0
      %834 = vmatpush1.msra.mxu0 0.0
      %835 = vmatprep.subr.mxu0 0.0
      %836 = vmatpush1.msra.mxu0 0.0
      %837 = vmatprep.subr.mxu0 0.0
      %838 = vmatpush1.msra.mxu0 0.0
      %839 = vmatprep.subr.mxu0 0.0
      %840 = vmatpush1.msra.mxu0 0.0
      %841 = vmatprep.subr.mxu0 0.0
      %842 = vmatpush1.msra.mxu0 0.0
      %843 = vmatprep.subr.mxu0 0.0
      %844 = vmatpush1.msra.mxu0 0.0
      %845 = vmatprep.subr.mxu0 0.0
      %846 = vmatpush1.msra.mxu0 0.0
      %847 = vmatprep.subr.mxu0 0.0
      %848 = vmatpush1.msra.mxu0 0.0
      %849 = vmatprep.subr.mxu0 0.0
      %850 = vmatpush1.msra.mxu0 0.0
      %851 = vmatprep.mubr.f32.mxu0 0.0
      %852 = vmatmul.mubr.f32.gmra.mrb[0].mxu0 %v785
      %v853 = vpop.f32.mrb[0].mxu0
      %v854 = vadd.f32 0.0, %v853
      %v855 = vpop.f32.mrb[0].mxu0
      %856 = vdwg.mxu0
      %v857 = vadd.f32 %v783, %v854
      %v858 = vtanh.pop %v857
      %s859 = scalar_lea.vmem %s210, %s781
      %860 = vst.msk [vmem:[%s859] sm:$0x3] %vm362, %v858
      %s861 = smul.u32 %s364, 7
      %s862 = smul.u32 %s861, 2
      %s863 = scalar_lea.vmem %s190, %s862
      %v864 = vld [vmem:[%s863] sm:$0x3]
      %v866 = vsel %vm285, %v858, 0
      %868 = vmatprep.subr.mxu0 0.0
      %869 = vmatpush1.msra.mxu0 %v276
      %870 = vmatprep.subr.mxu0 0.0
      %871 = vmatpush1.msra.mxu0 %v277
      %872 = vmatprep.subr.mxu0 0.0
      %873 = vmatpush1.msra.mxu0 %v278
      %874 = vmatprep.subr.mxu0 0.0
      %875 = vmatpush1.msra.mxu0 %v279
      %876 = vmatprep.subr.mxu0 0.0
      %877 = vmatpush1.msra.mxu0 0.0
      %878 = vmatprep.subr.mxu0 0.0
      %879 = vmatpush1.msra.mxu0 0.0
      %880 = vmatprep.subr.mxu0 0.0
      %881 = vmatpush1.msra.mxu0 0.0
      %882 = vmatprep.subr.mxu0 0.0
      %883 = vmatpush1.msra.mxu0 0.0
      %884 = vmatprep.subr.mxu0 0.0
      %885 = vmatpush1.msra.mxu0 0.0
      %886 = vmatprep.subr.mxu0 0.0
      %887 = vmatpush1.msra.mxu0 0.0
      %888 = vmatprep.subr.mxu0 0.0
      %889 = vmatpush1.msra.mxu0 0.0
      %890 = vmatprep.subr.mxu0 0.0
      %891 = vmatpush1.msra.mxu0 0.0
      %892 = vmatprep.subr.mxu0 0.0
      %893 = vmatpush1.msra.mxu0 0.0
      %894 = vmatprep.subr.mxu0 0.0
      %895 = vmatpush1.msra.mxu0 0.0
      %896 = vmatprep.subr.mxu0 0.0
      %897 = vmatpush1.msra.mxu0 0.0
      %898 = vmatprep.subr.mxu0 0.0
      %899 = vmatpush1.msra.mxu0 0.0
      %900 = vmatprep.subr.mxu0 0.0
      %901 = vmatpush1.msra.mxu0 0.0
      %902 = vmatprep.subr.mxu0 0.0
      %903 = vmatpush1.msra.mxu0 0.0
      %904 = vmatprep.subr.mxu0 0.0
      %905 = vmatpush1.msra.mxu0 0.0
      %906 = vmatprep.subr.mxu0 0.0
      %907 = vmatpush1.msra.mxu0 0.0
      %908 = vmatprep.subr.mxu0 0.0
      %909 = vmatpush1.msra.mxu0 0.0
      %910 = vmatprep.subr.mxu0 0.0
      %911 = vmatpush1.msra.mxu0 0.0
      %912 = vmatprep.subr.mxu0 0.0
      %913 = vmatpush1.msra.mxu0 0.0
      %914 = vmatprep.subr.mxu0 0.0
      %915 = vmatpush1.msra.mxu0 0.0
      %916 = vmatprep.subr.mxu0 0.0
      %917 = vmatpush1.msra.mxu0 0.0
      %918 = vmatprep.subr.mxu0 0.0
      %919 = vmatpush1.msra.mxu0 0.0
      %920 = vmatprep.subr.mxu0 0.0
      %921 = vmatpush1.msra.mxu0 0.0
      %922 = vmatprep.subr.mxu0 0.0
      %923 = vmatpush1.msra.mxu0 0.0
      %924 = vmatprep.subr.mxu0 0.0
      %925 = vmatpush1.msra.mxu0 0.0
      %926 = vmatprep.subr.mxu0 0.0
      %927 = vmatpush1.msra.mxu0 0.0
      %928 = vmatprep.subr.mxu0 0.0
      %929 = vmatpush1.msra.mxu0 0.0
      %930 = vmatprep.subr.mxu0 0.0
      %931 = vmatpush1.msra.mxu0 0.0
      %932 = vmatprep.mubr.f32.mxu0 0.0
      %933 = vmatmul.mubr.f32.gmra.mrb[0].mxu0 %v866
      %v934 = vpop.f32.mrb[0].mxu0
      %v935 = vadd.f32 0.0, %v934
      %v936 = vpop.f32.mrb[0].mxu0
      %937 = vdwg.mxu0
      %v938 = vadd.f32 %v864, %v935
      %v939 = vtanh.pop %v938
      %s940 = scalar_lea.vmem %s210, %s862
      %941 = vst.msk [vmem:[%s940] sm:$0x3] %vm362, %v939
      %942 = vst.msk [vmem:[#allocation2] sm:$0x3] %vm362, %v939
      %s943 = ssub.s32 1, %s17
      %s944 = smul.u32 %s943, %s18
      %s945 = ssub.s32 0, %s18
      %s946 = smul.u32 %s17, %s945
      %s947 = sadd.s32 %s944, %s946
      %s948 = smul.u32 8, %s947
      %p949 = scmp.lt.s32.totalorder %s17, 1
      %s950 = scalar_select %p949, %s17, 1
      %p951 = scmp.lt.s32.totalorder %s948, 7
      %s952 = scalar_select %p951, %s948, 7
      %s953 = smul.addr %s950, 8
      %s954 = sadd.s32 %s952, %s953
      %s955 = smul.addr %s954, 2
      %s956 = scalar_lea.vmem %s2, %s955
      // Predicated region
      $region63: #{rnn_cudnn_forward.2} parent=23 // pred_check
        %p957 = pneg %p93
      $region64: #{rnn_cudnn_forward.2} parent=23 // pred_check_branch
        %959 = sbr.rel (%p957) target = $region66
      $region65: #{rnn_cudnn_forward.2} parent=23 // pred_region
        %s960 = ssub.s32 1, %s17
        %s961 = smul.u32 %s960, %s18
        %s962 = ssub.s32 0, %s18
        %s963 = smul.u32 %s17, %s962
        %s964 = sadd.s32 %s961, %s963
        %s965 = smul.u32 8, %s964
      $region66: #{rnn_cudnn_forward.2} parent=23 // pred_fallthru
        _
    $region24: #{rnn_cudnn_forward.2} parent=5 // pred_fallthru
      _
    %p966 = scmp.le.s32.totalorder 2, %s8
    // Predicated region
    $region67: #{rnn_cudnn_forward.2} parent=5 // pred_check
      %p967 = pneg %p966
    $region68: #{rnn_cudnn_forward.2} parent=5 // pred_check_branch
      %969 = sbr.rel (%p967) target = $region70
    $region69: #{rnn_cudnn_forward.2} parent=5 // pred_region
      %s970 = ssub.s32 %s8, 2
      // Predicated region
      $region71: #{rnn_cudnn_forward.2} parent=69 // pred_check
        %p971 = pneg %p99
      $region72: #{rnn_cudnn_forward.2} parent=69 // pred_check_branch
        %973 = sbr.rel (%p971) target = $region74
      $region73: #{rnn_cudnn_forward.2} parent=69 // pred_region
        %s974 = ssub.s32 1, %s19
        %s975 = smul.u32 %s974, %s20
        %s976 = ssub.s32 0, %s20
        %s977 = smul.u32 %s19, %s976
        %s978 = sadd.s32 %s975, %s977
        %s979 = smul.u32 8, %s978
        %p980 = scmp.lt.s32.totalorder %s19, 1
        %s981 = scalar_select %p980, %s19, 1
        %p982 = scmp.lt.s32.totalorder %s979, 7
        %s983 = scalar_select %p982, %s979, 7
        %s984 = smul.addr %s981, 8
        %s985 = sadd.s32 %s983, %s984
        %s986 = smul.addr %s985, 2
        %s987 = scalar_lea.vmem %s2, %s986
      $region74: #{rnn_cudnn_forward.2} parent=69 // pred_fallthru
        _
    $region70: #{rnn_cudnn_forward.2} parent=5 // pred_fallthru
      _
  $region6: #{rnn_cudnn_forward.2} parent=0 // loop_footer
    %s12 = sadd.s32 1, %s8
  $region7: #{rnn_cudnn_forward.2} parent=0 // loop_footer_branch
    %7 = sbr.rel target = $region3
  $region8: #{rnn_cudnn_forward.2} parent=0 // loop_exit
    _
  %988 = vsyncmov [#allocation4]
  %s989 = vpop.sfrf %988
  %p990 = scmp.eq.s32.totalorder %s989, 0
  %p991 = pneg %p990
  %993 = shalt.err (%p991)

</llo_original>
